<compile_context>
chip_gen: v5e
topology: v5e:2x2
jax: 0.10.0
libtpu: 0.0.40
codegen_flags: <defaults>
</compile_context>

<pallas_src>
import math

import jax
import jax.numpy as jnp
from jax.experimental import pallas as pl
from jax.experimental.pallas import tpu as pltpu

LANE = 128       # lane width (last dim)
SUBLANE = 8      # f32 sublane width
TB_MAX = 512     # max batch tile (per-tile VMEM ~ a few hundred KiB)


def _round_up(n, m):
    return ((n + m - 1) // m) * m


# ----------------------------------------------------------------------------
# Fused kernel: one batch tile, all three layers.  Weights are resident in VMEM.
# Dots run in bf16 -> f32 accumulate; bias add / ReLU in f32.
# ----------------------------------------------------------------------------
def fcnn_fused_kernel(x_ref, w1_ref, b1_ref, w2_ref, b2_ref, w3_ref, b3_ref, o_ref):
    h = jnp.dot(x_ref[...], w1_ref[...], preferred_element_type=jnp.float32)
    h = jnp.maximum(h + b1_ref[...], 0.0).astype(jnp.bfloat16)

    h = jnp.dot(h, w2_ref[...], preferred_element_type=jnp.float32)
    h = jnp.maximum(h + b2_ref[...], 0.0).astype(jnp.bfloat16)

    out = jnp.dot(h, w3_ref[...], preferred_element_type=jnp.float32) + b3_ref[...]
    o_ref[...] = out.astype(o_ref.dtype)


# ----------------------------------------------------------------------------
# One-time parameter prep:
#   PyTorch (out, in) weight, (out,) bias -> (k_pad, n_pad) bf16 / (1, n_pad) f32.
# Zero padding is exact (see header note).
# ----------------------------------------------------------------------------
def _prep_layer(w_out_in, bias, k_pad, n_pad):
    n_out, n_in = w_out_in.shape
    w = jnp.zeros((k_pad, n_pad), jnp.float32).at[:n_in, :n_out].set(
        jnp.asarray(w_out_in, jnp.float32).T)
    b = jnp.zeros((1, n_pad), jnp.float32).at[0, :n_out].set(
        jnp.asarray(bias, jnp.float32))
    return w.astype(jnp.bfloat16), b


def make_fcnn_forward(params, input_dim, hidden_dims, output_dim):
    h1_pad = _round_up(hidden_dims[0], LANE)
    h2_pad = _round_up(hidden_dims[1], LANE)
    w1, b1 = _prep_layer(params["fc1"]["weight"], params["fc1"]["bias"], input_dim, h1_pad)
    w2, b2 = _prep_layer(params["fc2"]["weight"], params["fc2"]["bias"], h1_pad, h2_pad)
    w3, b3 = _prep_layer(params["fc3"]["weight"], params["fc3"]["bias"], h2_pad, output_dim)

    def _resident(a):  # full-extent block, constant index -> stays in VMEM
        return pl.BlockSpec(a.shape, lambda i: (0,) * a.ndim)

    @jax.jit
    def _fwd(x, w1, b1, w2, b2, w3, b3):
        B = x.shape[0]
        # Batch tile: full (padded) batch when small, else 512-row tiles.
        TB = min(TB_MAX, _round_up(max(B, SUBLANE), SUBLANE))
        B_pad = _round_up(B, TB)

        xb = x.astype(jnp.bfloat16)
        if B_pad != B:
            xb = jnp.pad(xb, ((0, B_pad - B), (0, 0)))

        out_p = pl.pallas_call(
            fcnn_fused_kernel,
            out_shape=jax.ShapeDtypeStruct((B_pad, output_dim), jnp.float32),
            grid=(B_pad // TB,),
            in_specs=[
                pl.BlockSpec((TB, input_dim), lambda i: (i, 0)),   # x: pipelined
                _resident(w1), _resident(b1),
                _resident(w2), _resident(b2),
                _resident(w3), _resident(b3),
            ],
            out_specs=pl.BlockSpec((TB, output_dim), lambda i: (i, 0)),
            compiler_params=pltpu.CompilerParams(
                dimension_semantics=("parallel",)),
        )(xb, w1, b1, w2, b2, w3, b3)

        return out_p if B_pad == B else out_p[:B]

    def forward(x):
        return _fwd(x, w1, b1, w2, b2, w3, b3)

    return forward


# ----------------------------------------------------------------------------
# nn.Linear-style init: weight, bias ~ U(-1/sqrt(fan_in), 1/sqrt(fan_in))
# ----------------------------------------------------------------------------
def init_linear(key, n_in, n_out):
    kw, kb = jax.random.split(key)
    bound = 1.0 / math.sqrt(n_in)
    weight = jax.random.uniform(kw, (n_out, n_in), jnp.float32, -bound, bound)
    bias = jax.random.uniform(kb, (n_out,), jnp.float32, -bound, bound)
    return dict(weight=weight, bias=bias)


# Pure-JAX references.
def ref_forward_f32(x, p):
    h = jnp.maximum(x @ p["fc1"]["weight"].T + p["fc1"]["bias"], 0.0)
    h = jnp.maximum(h @ p["fc2"]["weight"].T + p["fc2"]["bias"], 0.0)
    return h @ p["fc3"]["weight"].T + p["fc3"]["bias"]


def ref_forward_bf16(x, p):
    def lin(h, layer):
        return jnp.dot(h.astype(jnp.bfloat16),
                       layer["weight"].T.astype(jnp.bfloat16),
                       preferred_element_type=jnp.float32) + layer["bias"]
    h = jnp.maximum(lin(x, p["fc1"]), 0.0)
    h = jnp.maximum(lin(h, p["fc2"]), 0.0)
    return lin(h, p["fc3"])


if __name__ == "__main__":
    # FcNN(input_dim=32, hidden_dims=[64, 48], output_dim=16)
    input_dim, hidden_dims, output_dim = 32, (64, 48), 16

    root = jax.random.PRNGKey(0)
    kx, kx2, k1, k2, k3 = jax.random.split(root, 5)

    params = {
        "fc1": init_linear(k1, input_dim, hidden_dims[0]),
        "fc2": init_linear(k2, hidden_dims[0], hidden_dims[1]),
        "fc3": init_linear(k3, hidden_dims[1], output_dim),
    }

    forward = make_fcnn_forward(params, input_dim, hidden_dims, output_dim)

    # Small batch (single tile).
    x_small = jax.random.normal(kx, (8, input_dim), dtype=jnp.float32)
    out_small = jax.block_until_ready(forward(x_small))
    assert out_small.shape == (8, output_dim)
    assert bool(jnp.all(jnp.isfinite(out_small)))
    assert jnp.allclose(out_small, ref_forward_bf16(x_small, params), atol=1e-3, rtol=1e-3)
    assert jnp.allclose(out_small, ref_forward_f32(x_small, params), atol=5e-2, rtol=5e-2)

    # Larger, non-tile-aligned batch (exercises the batch grid + padding path).
    x_big = jax.random.normal(kx2, (1000, input_dim), dtype=jnp.float32)
    out_big = jax.block_until_ready(forward(x_big))
    assert out_big.shape == (1000, output_dim)
    assert bool(jnp.all(jnp.isfinite(out_big)))
    assert jnp.allclose(out_big, ref_forward_bf16(x_big, params), atol=1e-3, rtol=1e-3)
    assert jnp.allclose(out_big, ref_forward_f32(x_big, params), atol=5e-2, rtol=5e-2)

    print("KERNEL_OK")
</pallas_src>

<mosaic_0001>
module attributes {stable_mosaic.version = 11 : i64} {
  func.func @fcnn_fused_kernel(%arg0: i32, %arg1: memref<8x32xbf16, #tpu.memory_space<vmem>>, %arg2: memref<32x128xbf16, #tpu.memory_space<vmem>>, %arg3: memref<1x128xf32, #tpu.memory_space<vmem>>, %arg4: memref<128x128xbf16, #tpu.memory_space<vmem>>, %arg5: memref<1x128xf32, #tpu.memory_space<vmem>>, %arg6: memref<128x16xbf16, #tpu.memory_space<vmem>>, %arg7: memref<1x16xf32, #tpu.memory_space<vmem>>, %arg8: memref<8x16xf32, #tpu.memory_space<vmem>>) attributes {dimension_semantics = [#tpu.dimension_semantics<parallel>], iteration_bounds = array<i64: 1>, scalar_prefetch = 0 : i64, scratch_operands = 0 : i64, tpu.core_type = #tpu.core_type<tc>, window_params = [{transform_indices = @transform_0, window_bounds = array<i64: 8, 32>}, {pipeline_mode = #tpu.pipeline_mode<synchronous>, transform_indices = @transform_1, window_bounds = array<i64: 32, 128>}, {pipeline_mode = #tpu.pipeline_mode<synchronous>, transform_indices = @transform_2, window_bounds = array<i64: 1, 128>}, {pipeline_mode = #tpu.pipeline_mode<synchronous>, transform_indices = @transform_3, window_bounds = array<i64: 128, 128>}, {pipeline_mode = #tpu.pipeline_mode<synchronous>, transform_indices = @transform_4, window_bounds = array<i64: 1, 128>}, {pipeline_mode = #tpu.pipeline_mode<synchronous>, transform_indices = @transform_5, window_bounds = array<i64: 128, 16>}, {pipeline_mode = #tpu.pipeline_mode<synchronous>, transform_indices = @transform_6, window_bounds = array<i64: 1, 16>}, {transform_indices = @transform_7, window_bounds = array<i64: 8, 16>}]} {
    %c0 = arith.constant 0 : index
    %c0_0 = arith.constant 0 : index
    %0 = vector.load %arg1[%c0, %c0_0] : memref<8x32xbf16, #tpu.memory_space<vmem>>, vector<8x32xbf16>
    %c0_1 = arith.constant 0 : index
    %c0_2 = arith.constant 0 : index
    %1 = vector.load %arg2[%c0_1, %c0_2] : memref<32x128xbf16, #tpu.memory_space<vmem>>, vector<32x128xbf16>
    %cst = arith.constant dense<0.000000e+00> : vector<8x128xf32>
    %2 = tpu.matmul %0, %1, %cst {dimension_numbers = #tpu.dot_dimension_numbers<[1], [0], [0], [1], [0, 0, 1, 1], [], []>} : vector<8x32xbf16>, vector<32x128xbf16>, vector<8x128xf32> -> vector<8x128xf32>
    %c0_3 = arith.constant 0 : index
    %c0_4 = arith.constant 0 : index
    %3 = vector.load %arg3[%c0_3, %c0_4] : memref<1x128xf32, #tpu.memory_space<vmem>>, vector<1x128xf32>
    %4 = vector.broadcast %3 : vector<1x128xf32> to vector<8x128xf32>
    %5 = arith.addf %2, %4 : vector<8x128xf32>
    %cst_5 = arith.constant 0.000000e+00 : f32
    %6 = vector.broadcast %cst_5 : f32 to vector<8x128xf32>
    %7 = arith.maximumf %5, %6 : vector<8x128xf32>
    %8 = arith.truncf %7 : vector<8x128xf32> to vector<8x128xbf16>
    %c0_6 = arith.constant 0 : index
    %c0_7 = arith.constant 0 : index
    %9 = vector.load %arg4[%c0_6, %c0_7] : memref<128x128xbf16, #tpu.memory_space<vmem>>, vector<128x128xbf16>
    %cst_8 = arith.constant dense<0.000000e+00> : vector<8x128xf32>
    %10 = tpu.matmul %8, %9, %cst_8 {dimension_numbers = #tpu.dot_dimension_numbers<[1], [0], [0], [1], [0, 0, 1, 1], [], []>} : vector<8x128xbf16>, vector<128x128xbf16>, vector<8x128xf32> -> vector<8x128xf32>
    %c0_9 = arith.constant 0 : index
    %c0_10 = arith.constant 0 : index
    %11 = vector.load %arg5[%c0_9, %c0_10] : memref<1x128xf32, #tpu.memory_space<vmem>>, vector<1x128xf32>
    %12 = vector.broadcast %11 : vector<1x128xf32> to vector<8x128xf32>
    %13 = arith.addf %10, %12 : vector<8x128xf32>
    %cst_11 = arith.constant 0.000000e+00 : f32
    %14 = vector.broadcast %cst_11 : f32 to vector<8x128xf32>
    %15 = arith.maximumf %13, %14 : vector<8x128xf32>
    %16 = arith.truncf %15 : vector<8x128xf32> to vector<8x128xbf16>
    %c0_12 = arith.constant 0 : index
    %c0_13 = arith.constant 0 : index
    %17 = vector.load %arg6[%c0_12, %c0_13] : memref<128x16xbf16, #tpu.memory_space<vmem>>, vector<128x16xbf16>
    %cst_14 = arith.constant dense<0.000000e+00> : vector<8x16xf32>
    %18 = tpu.matmul %16, %17, %cst_14 {dimension_numbers = #tpu.dot_dimension_numbers<[1], [0], [0], [1], [0, 0, 1, 1], [], []>} : vector<8x128xbf16>, vector<128x16xbf16>, vector<8x16xf32> -> vector<8x16xf32>
    %c0_15 = arith.constant 0 : index
    %c0_16 = arith.constant 0 : index
    %19 = vector.load %arg7[%c0_15, %c0_16] : memref<1x16xf32, #tpu.memory_space<vmem>>, vector<1x16xf32>
    %20 = vector.broadcast %19 : vector<1x16xf32> to vector<8x16xf32>
    %21 = arith.addf %18, %20 : vector<8x16xf32>
    %c0_17 = arith.constant 0 : index
    %c0_18 = arith.constant 0 : index
    %22 = vector.load %arg8[%c0_17, %c0_18] : memref<8x16xf32, #tpu.memory_space<vmem>>, vector<8x16xf32>
    tpu.vector_store %arg8[%c0_17, %c0_18], %21 {strides = array<i32>} : memref<8x16xf32, #tpu.memory_space<vmem>>, vector<8x16xf32>,
    return
  }
  func.func @transform_0(%arg0: i32) -> (i32, i32) {
    %c0_i32 = arith.constant 0 : i32
    %c0_i32_0 = arith.constant 0 : i32
    return %arg0, %c0_i32 : i32, i32
  }
  func.func @transform_1(%arg0: i32) -> (i32, i32) {
    %c0_i32 = arith.constant 0 : i32
    %c0_i32_0 = arith.constant 0 : i32
    %c0_i32_1 = arith.constant 0 : i32
    return %c0_i32, %c0_i32_0 : i32, i32
  }
  func.func @transform_2(%arg0: i32) -> (i32, i32) {
    %c0_i32 = arith.constant 0 : i32
    %c0_i32_0 = arith.constant 0 : i32
    %c0_i32_1 = arith.constant 0 : i32
    return %c0_i32, %c0_i32_0 : i32, i32
  }
  func.func @transform_3(%arg0: i32) -> (i32, i32) {
    %c0_i32 = arith.constant 0 : i32
    %c0_i32_0 = arith.constant 0 : i32
    %c0_i32_1 = arith.constant 0 : i32
    return %c0_i32, %c0_i32_0 : i32, i32
  }
  func.func @transform_4(%arg0: i32) -> (i32, i32) {
    %c0_i32 = arith.constant 0 : i32
    %c0_i32_0 = arith.constant 0 : i32
    %c0_i32_1 = arith.constant 0 : i32
    return %c0_i32, %c0_i32_0 : i32, i32
  }
  func.func @transform_5(%arg0: i32) -> (i32, i32) {
    %c0_i32 = arith.constant 0 : i32
    %c0_i32_0 = arith.constant 0 : i32
    %c0_i32_1 = arith.constant 0 : i32
    return %c0_i32, %c0_i32_0 : i32, i32
  }
  func.func @transform_6(%arg0: i32) -> (i32, i32) {
    %c0_i32 = arith.constant 0 : i32
    %c0_i32_0 = arith.constant 0 : i32
    %c0_i32_1 = arith.constant 0 : i32
    return %c0_i32, %c0_i32_0 : i32, i32
  }
  func.func @transform_7(%arg0: i32) -> (i32, i32) {
    %c0_i32 = arith.constant 0 : i32
    %c0_i32_0 = arith.constant 0 : i32
    return %arg0, %c0_i32 : i32, i32
  }
}

</mosaic_0001>

<llo_original>
// kernel: _fwd.1
$region0: #{_fwd.1}
  #allocation0 [shape = 'u32[]', space=smem, size = 0x4, offset = 0x4, fixed_abs, tag = 'smem constant byte address 0x4 - core index']
  #allocation1 [shape = 'u32[72,128]{1,0:T(1,128)}', space=vmem, size = 0x9000, scoped, tag = 'internal scratch']
  %s0 = inlined_call_operand.vmem [shape: bf16[8,32], index: 0, kind: input, shape index: {}]
  %s1 = inlined_call_operand.hbm [shape: bf16[32,128], index: 1, kind: input, shape index: {}]
  %s2 = inlined_call_operand.vmem [shape: f32[1,128], index: 2, kind: input, shape index: {}]
  %s3 = inlined_call_operand.vmem [shape: bf16[128,128], index: 3, kind: input, shape index: {}]
  %s4 = inlined_call_operand.vmem [shape: f32[1,128], index: 4, kind: input, shape index: {}]
  %s5 = inlined_call_operand.vmem [shape: bf16[128,16], index: 5, kind: input, shape index: {}]
  %s6 = inlined_call_operand.vmem [shape: f32[1,16], index: 6, kind: input, shape index: {}]
  %s7 = inlined_call_operand.hbm [shape: f32[8,16], index: 7, kind: output, shape index: {}]
  %s8 = sld [smem:[#allocation0]]
  $region42: #{_fwd.1} parent=0
    _
  %s10 = ssub.s32 1, %s8
  %s11 = scalar_select 0, %s10, %s8
  $region1: #{_fwd.1} parent=0
    #allocation2 [shape = 'u8[8192]{0}', space=vmem, size = 0x2000, scoped, tag = 'input window, operand 1, single buffered']
    #allocation3 [shape = 's32[1]{0}', space=sflag, size = 0x4, scoped, tag = 'scoped memory for _fwd.1']
    #allocation4 [shape = 's32[1]{0}', space=sflag, size = 0x4, scoped, tag = 'scoped memory for _fwd.1']
    #allocation5 [shape = 'u8[4096]{0}', space=vmem, size = 0x1000, scoped, tag = 'output window, operand 0, single buffered']
    %12 = vsyncpa [#allocation3], 0
    %13 = vsyncpa [#allocation4], 0
    // Predicated region
    $region2: #{_fwd.1} parent=1 // pred_check
      _
    $region3: #{_fwd.1} parent=1 // pred_check_branch
      %15 = sbr.rel (0) target = $region5
    $region4: #{_fwd.1} parent=1 // pred_region
      _
    $region5: #{_fwd.1} parent=1 // pred_fallthru
      _
    // Predicated region
    $region6: #{_fwd.1} parent=1 // pred_check
      _
    $region7: #{_fwd.1} parent=1 // pred_check_branch
      %17 = sbr.rel (0) target = $region9
    $region8: #{_fwd.1} parent=1 // pred_region
      %19 = vsyncadd [#allocation3], 0
      %s20 = sshll.u32 %s1, 4
      %s21 = int_to_ptr.hbm [resolvable:$true] %s20
      %s22 = sshll.u32 [#allocation2], 4
      %s23 = int_to_ptr.vmem [resolvable:$true] %s22
      %28 = dma.hbm_to_vmem [thread:$0]  %s21, 256, %s23, [#allocation3], 64, 64, 4
    $region9: #{_fwd.1} parent=1 // pred_fallthru
      _
    // Predicated region
    $region10: #{_fwd.1} parent=1 // pred_check
      _
    $region11: #{_fwd.1} parent=1 // pred_check_branch
      %30 = sbr.rel (0) target = $region13
    $region12: #{_fwd.1} parent=1 // pred_region
      _
    $region13: #{_fwd.1} parent=1 // pred_fallthru
      _
    // Predicated region
    $region14: #{_fwd.1} parent=1 // pred_check
      _
    $region15: #{_fwd.1} parent=1 // pred_check_branch
      %32 = sbr.rel (0) target = $region17
    $region16: #{_fwd.1} parent=1 // pred_region
      _
    $region17: #{_fwd.1} parent=1 // pred_fallthru
      _
    // Predicated region
    $region18: #{_fwd.1} parent=1 // pred_check
      _
    $region19: #{_fwd.1} parent=1 // pred_check_branch
      %34 = sbr.rel (0) target = $region21
    $region20: #{_fwd.1} parent=1 // pred_region
      _
    $region21: #{_fwd.1} parent=1 // pred_fallthru
      _
    // Predicated region
    $region22: #{_fwd.1} parent=1 // pred_check
      _
    $region23: #{_fwd.1} parent=1 // pred_check_branch
      %36 = sbr.rel (0) target = $region25
    $region24: #{_fwd.1} parent=1 // pred_region
      _
    $region25: #{_fwd.1} parent=1 // pred_fallthru
      _
    // Predicated region
    $region26: #{_fwd.1} parent=1 // pred_check
      _
    $region27: #{_fwd.1} parent=1 // pred_check_branch
      %38 = sbr.rel (0) target = $region29
    $region28: #{_fwd.1} parent=1 // pred_region
      _
    $region29: #{_fwd.1} parent=1 // pred_fallthru
      _
    // Predicated region
    $region30: #{_fwd.1} parent=1 // pred_check
      _
    $region31: #{_fwd.1} parent=1 // pred_check_branch
      %40 = sbr.rel (0) target = $region33
    $region32: #{_fwd.1} parent=1 // pred_region
      %42 = dma.done [#allocation3], 256
    $region33: #{_fwd.1} parent=1 // pred_fallthru
      _
    %v44 = vld [vmem:[%s0] sm:$0xf]
    %v45 = vld [vmem:[#allocation2] sm:$0xf]
    %v46 = vld [vmem:[#allocation2 + $0x4] sm:$0xf]
    %v47 = vld [vmem:[#allocation2 + $0x8] sm:$0xf]
    %v48 = vld [vmem:[#allocation2 + $0xc] sm:$0xf]
    %v49 = vld [vmem:[%s2] sm:$0x1]
    %v51 = vperm.slane %v49, 0
    %v57 = vunpack.c.l.b16 %v45
    %v58 = vunpack.c.l.b16 %v46
    %v59 = vunpack.c.l.b16 %v47
    %v60 = vunpack.c.l.b16 %v48
    %v61 = vpack.c.b16 %v58, %v57
    %v62 = vpack.c.b16 %v60, %v59
    %vm65 = vcmask 261120
    %v67 = vsel %vm65, %v44, 0
    %69 = vmatpush.bf16.msra.mxu0 0
    %70 = vmatpush.bf16.msra.mxu0 0
    %71 = vmatpush.bf16.msra.mxu0 0
    %72 = vmatpush.bf16.msra.mxu0 0
    %73 = vmatpush.bf16.msra.mxu0 0
    %74 = vmatpush.bf16.msra.mxu0 0
    %75 = vmatpush.bf16.msra.mxu0 %v62
    %76 = vmatpush.bf16.msra.mxu0 %v61
    %77 = vmatmul.bf16.gmra.mxu0 %v67
    %v78 = vpop.f32.mrf.mxu0
    %v79 = vadd.f32 %v51, %v78
    %v80 = vpop.f32.mrf.mxu0
    %81 = vdwg.mxu0
    %v82 = vmax.f32 %v79, 0.0
    %v83 = vpack.c.bf16 %v82, %v82
    %v84 = vld [vmem:[%s3] sm:$0xf]
    %v85 = vld [vmem:[%s3 + $0x4] sm:$0xf]
    %v86 = vld [vmem:[%s3 + $0x8] sm:$0xf]
    %v87 = vld [vmem:[%s3 + $0xc] sm:$0xf]
    %v88 = vld [vmem:[%s3 + $0x10] sm:$0xf]
    %v89 = vld [vmem:[%s3 + $0x14] sm:$0xf]
    %v90 = vld [vmem:[%s3 + $0x18] sm:$0xf]
    %v91 = vld [vmem:[%s3 + $0x1c] sm:$0xf]
    %v92 = vld [vmem:[%s3 + $0x20] sm:$0xf]
    %v93 = vld [vmem:[%s3 + $0x24] sm:$0xf]
    %v94 = vld [vmem:[%s3 + $0x28] sm:$0xf]
    %v95 = vld [vmem:[%s3 + $0x2c] sm:$0xf]
    %v96 = vld [vmem:[%s3 + $0x30] sm:$0xf]
    %v97 = vld [vmem:[%s3 + $0x34] sm:$0xf]
    %v98 = vld [vmem:[%s3 + $0x38] sm:$0xf]
    %v99 = vld [vmem:[%s3 + $0x3c] sm:$0xf]
    %v100 = vld [vmem:[%s4] sm:$0x1]
    %v102 = vperm.slane %v100, 0
    %v120 = vunpack.c.l.b16 %v84
    %v121 = vunpack.c.l.b16 %v85
    %v122 = vunpack.c.l.b16 %v86
    %v123 = vunpack.c.l.b16 %v87
    %v124 = vunpack.c.l.b16 %v88
    %v125 = vunpack.c.l.b16 %v89
    %v126 = vunpack.c.l.b16 %v90
    %v127 = vunpack.c.l.b16 %v91
    %v128 = vunpack.c.l.b16 %v92
    %v129 = vunpack.c.l.b16 %v93
    %v130 = vunpack.c.l.b16 %v94
    %v131 = vunpack.c.l.b16 %v95
    %v132 = vunpack.c.l.b16 %v96
    %v133 = vunpack.c.l.b16 %v97
    %v134 = vunpack.c.l.b16 %v98
    %v135 = vunpack.c.l.b16 %v99
    %v136 = vpack.c.b16 %v121, %v120
    %v137 = vpack.c.b16 %v123, %v122
    %v138 = vpack.c.b16 %v125, %v124
    %v139 = vpack.c.b16 %v127, %v126
    %v140 = vpack.c.b16 %v129, %v128
    %v141 = vpack.c.b16 %v131, %v130
    %v142 = vpack.c.b16 %v133, %v132
    %v143 = vpack.c.b16 %v135, %v134
    %152 = vmatpush.bf16.msra.mxu0 %v143
    %153 = vmatpush.bf16.msra.mxu0 %v142
    %154 = vmatpush.bf16.msra.mxu0 %v141
    %155 = vmatpush.bf16.msra.mxu0 %v140
    %156 = vmatpush.bf16.msra.mxu0 %v139
    %157 = vmatpush.bf16.msra.mxu0 %v138
    %158 = vmatpush.bf16.msra.mxu0 %v137
    %159 = vmatpush.bf16.msra.mxu0 %v136
    %160 = vmatmul.bf16.gmra.mxu0 %v83
    %v161 = vpop.f32.mrf.mxu0
    %v162 = vadd.f32 %v102, %v161
    %v163 = vpop.f32.mrf.mxu0
    %164 = vdwg.mxu0
    %v165 = vmax.f32 %v162, 0.0
    %v166 = vpack.c.bf16 %v165, %v165
    %v167 = vld [vmem:[%s5] sm:$0xf]
    %v168 = vld [vmem:[%s5 + $0x4] sm:$0xf]
    %v169 = vld [vmem:[%s5 + $0x8] sm:$0xf]
    %v170 = vld [vmem:[%s5 + $0xc] sm:$0xf]
    %v171 = vld [vmem:[%s5 + $0x10] sm:$0xf]
    %v172 = vld [vmem:[%s5 + $0x14] sm:$0xf]
    %v173 = vld [vmem:[%s5 + $0x18] sm:$0xf]
    %v174 = vld [vmem:[%s5 + $0x1c] sm:$0xf]
    %v175 = vld [vmem:[%s5 + $0x20] sm:$0xf]
    %v176 = vld [vmem:[%s5 + $0x24] sm:$0xf]
    %v177 = vld [vmem:[%s5 + $0x28] sm:$0xf]
    %v178 = vld [vmem:[%s5 + $0x2c] sm:$0xf]
    %v179 = vld [vmem:[%s5 + $0x30] sm:$0xf]
    %v180 = vld [vmem:[%s5 + $0x34] sm:$0xf]
    %v181 = vld [vmem:[%s5 + $0x38] sm:$0xf]
    %v182 = vld [vmem:[%s5 + $0x3c] sm:$0xf]
    %v183 = vld [vmem:[%s6] sm:$0x1]
    %v185 = vperm.slane %v183, 0
    %v203 = vunpack.c.l.b16 %v167
    %v204 = vunpack.c.l.b16 %v168
    %v205 = vunpack.c.l.b16 %v169
    %v206 = vunpack.c.l.b16 %v170
    %v207 = vunpack.c.l.b16 %v171
    %v208 = vunpack.c.l.b16 %v172
    %v209 = vunpack.c.l.b16 %v173
    %v210 = vunpack.c.l.b16 %v174
    %v211 = vunpack.c.l.b16 %v175
    %v212 = vunpack.c.l.b16 %v176
    %v213 = vunpack.c.l.b16 %v177
    %v214 = vunpack.c.l.b16 %v178
    %v215 = vunpack.c.l.b16 %v179
    %v216 = vunpack.c.l.b16 %v180
    %v217 = vunpack.c.l.b16 %v181
    %v218 = vunpack.c.l.b16 %v182
    %v219 = vpack.c.b16 %v204, %v203
    %v220 = vpack.c.b16 %v206, %v205
    %v221 = vpack.c.b16 %v208, %v207
    %v222 = vpack.c.b16 %v210, %v209
    %v223 = vpack.c.b16 %v212, %v211
    %v224 = vpack.c.b16 %v214, %v213
    %v225 = vpack.c.b16 %v216, %v215
    %v226 = vpack.c.b16 %v218, %v217
    %235 = vmatpush.bf16.msra.mxu0 %v226
    %236 = vmatpush.bf16.msra.mxu0 %v225
    %237 = vmatpush.bf16.msra.mxu0 %v224
    %238 = vmatpush.bf16.msra.mxu0 %v223
    %239 = vmatpush.bf16.msra.mxu0 %v222
    %240 = vmatpush.bf16.msra.mxu0 %v221
    %241 = vmatpush.bf16.msra.mxu0 %v220
    %242 = vmatpush.bf16.msra.mxu0 %v219
    %243 = vmatmul.bf16.gmra.mxu0 %v166
    %v244 = vpop.f32.mrf.mxu0
    %v245 = vadd.f32 %v185, %v244
    %v246 = vpop.f32.mrf.mxu0
    %247 = vdwg.mxu0
    %vm248 = vcmask 130048
    %249 = vst.msk [vmem:[#allocation5] sm:$0xff] %vm248, %v245
    // Predicated region
    $region34: #{_fwd.1} parent=1 // pred_check
      _
    $region35: #{_fwd.1} parent=1 // pred_check_branch
      %251 = sbr.rel (0) target = $region37
    $region36: #{_fwd.1} parent=1 // pred_region
      %253 = vsyncadd [#allocation4], 0
      %s255 = sshll.u32 [#allocation5], 4
      %s256 = int_to_ptr.vmem [resolvable:$true] %s255
      %s257 = sshll.u32 %s7, 4
      %s258 = int_to_ptr.hbm [resolvable:$true] %s257
      %260 = dma.vmem_to_hbm [thread:$0]  %s256, 128, %s258, [#allocation4]
    $region37: #{_fwd.1} parent=1 // pred_fallthru
      _
    // Predicated region
    $region38: #{_fwd.1} parent=1 // pred_check
      _
    $region39: #{_fwd.1} parent=1 // pred_check_branch
      %262 = sbr.rel (0) target = $region41
    $region40: #{_fwd.1} parent=1 // pred_region
      %264 = dma.done [#allocation4], 128
    $region41: #{_fwd.1} parent=1 // pred_fallthru
      _
    %265 = vsyncpa [#allocation3], 1
    %266 = vsyncpa [#allocation4], 1

</llo_original>
